<compile_context>
chip_gen: v6e
topology: v6e:2x2x1
jax: 0.10.0
libtpu: 0.0.40
codegen_flags: <defaults>
</compile_context>

<pallas_src>
import functools

import jax
import jax.numpy as jnp
from jax import lax
from jax.experimental import pallas as pl
from jax.experimental.pallas import tpu as pltpu


# Tap order matches weight layout (kh, kw) with dh = kh - 1, dw = kw - 1.
_TAPS = tuple((dh, dw) for dh in (-1, 0, 1) for dw in (-1, 0, 1))


def _im2col(x, *, m, wh):
    """Stack the 9 lane-rolled copies of x along the contraction axis.

    x: (C, m).  Returns (9*C, m) where row block k holds x shifted by tap k's
    flat lane offset d = dh*wh + dw, i.e. shifted[:, j] = x[:, (j + d) % m].
    Wraparound / cross-image leakage is zeroed afterwards by the precomputed
    per-tap validity masks (which implement the conv's zero padding).
    """
    blocks = []
    for dh, dw in _TAPS:
        d = dh * wh + dw
        blocks.append(x if d == 0 else pltpu.roll(x, shift=(-d) % m, axis=1))
    return jnp.concatenate(blocks, axis=0)


def _bn_relu(y, gamma, beta, eps=1e-5):
    """Training-mode BatchNorm (biased batch stats, single pass) + ReLU.

    y: (C, m) f32; gamma/beta: (C, 1) f32.  Stats reduce over the lane axis
    (= all N*H*W pixels), matching per-channel batch statistics.
    """
    mean = jnp.mean(y, axis=1, keepdims=True)
    var = jnp.maximum(jnp.mean(y * y, axis=1, keepdims=True) - mean * mean, 0.0)
    scale = gamma * lax.rsqrt(var + eps)
    shift = beta - mean * scale
    return jnp.maximum(y * scale + shift, 0.0)


def _encoder_kernel(a_ref, m1_ref, m2_ref, w1_ref, w2_ref, bn_ref, o_ref,
                    *, m, wh):
    bn = bn_ref[...]                                          # (Cout, 4) f32

    # ---- Conv1: one MXU dot over K = 9*Cin, then BN1 + ReLU ---------------
    a = a_ref[...]                                            # (Cin, m) f32
    x1 = (_im2col(a, m=m, wh=wh) * m1_ref[...]).astype(jnp.bfloat16)
    y1 = jnp.dot(w1_ref[...], x1, preferred_element_type=jnp.float32)
    h1 = _bn_relu(y1, bn[:, 0:1], bn[:, 1:2])                 # (Cout, m) f32

    # ---- Conv2: one MXU dot over K = 9*Cout, then BN2 + ReLU --------------
    # Operand built directly from vreg-resident h1 (no scratch round-trip).
    x2 = (_im2col(h1, m=m, wh=wh) * m2_ref[...]).astype(jnp.bfloat16)
    y2 = jnp.dot(w2_ref[...], x2, preferred_element_type=jnp.float32)
    o_ref[...] = _bn_relu(y2, bn[:, 2:3], bn[:, 3:4])         # lane-dense store


@jax.jit
def encoder_forward(params, x):
    """x: (N, Cin, H, W) f32 NCHW -> (N, Cout, H//2, W//2) f32 NCHW."""
    N, Cin, H, W = x.shape
    Cout = params["c1_w"].shape[0]
    Hh, Wh = H // 2, W // 2
    M = N * Hh * Wh

    # MaxPool2d(2) + NCHW -> lane-dense (Cin, M) relayout: cheap XLA glue at
    # these sizes (also shrinks the kernel's input DMA by 4x).
    # TODO(synk): fuse pool + relayout into the kernel for production sizes.
    pooled = x.reshape(N, Cin, Hh, 2, Wh, 2).max(axis=(3, 5))
    a = jnp.transpose(pooled, (1, 0, 2, 3)).reshape(Cin, M).astype(jnp.float32)

    # Grid-constant per-tap validity masks, pre-broadcast to the im2col row
    # blocks (so the kernel applies them as one f32 multiply per conv).
    j = jnp.arange(M, dtype=jnp.int32)
    h_idx = (j // Wh) % Hh
    w_idx = j % Wh
    rows = []
    for dh, dw in _TAPS:
        ok = ((h_idx + dh >= 0) & (h_idx + dh < Hh) &
              (w_idx + dw >= 0) & (w_idx + dw < Wh))
        rows.append(ok)
    masks9 = jnp.stack(rows).astype(jnp.float32)              # (9, M)
    mask1 = jnp.repeat(masks9, Cin, axis=0)                   # (9*Cin, M)
    mask2 = jnp.repeat(masks9, Cout, axis=0)                  # (9*Cout, M)

    # Conv weights (Cout, Cin, 3, 3) -> single im2col matrices, bf16 for MXU.
    w1 = jnp.transpose(params["c1_w"], (0, 2, 3, 1)).reshape(Cout, 9 * Cin)
    w2 = jnp.transpose(params["c2_w"], (0, 2, 3, 1)).reshape(Cout, 9 * Cout)
    w1 = w1.astype(jnp.bfloat16)
    w2 = w2.astype(jnp.bfloat16)

    # Pack both BNs' gamma/beta into one (Cout, 4) f32 operand.
    bn = jnp.stack([params["bn1_g"], params["bn1_b"],
                    params["bn2_g"], params["bn2_b"]], axis=1).astype(jnp.float32)

    kernel = functools.partial(_encoder_kernel, m=M, wh=Wh)
    out_t = pl.pallas_call(
        kernel,
        out_shape=jax.ShapeDtypeStruct((Cout, M), jnp.float32),
        grid=(1,),
        in_specs=[
            pl.BlockSpec((Cin, M), lambda i: (0, 0)),
            pl.BlockSpec((9 * Cin, M), lambda i: (0, 0)),
            pl.BlockSpec((9 * Cout, M), lambda i: (0, 0)),
            pl.BlockSpec((Cout, 9 * Cin), lambda i: (0, 0)),
            pl.BlockSpec((Cout, 9 * Cout), lambda i: (0, 0)),
            pl.BlockSpec((Cout, 4), lambda i: (0, 0)),
        ],
        out_specs=pl.BlockSpec((Cout, M), lambda i: (0, 0)),
        compiler_params=pltpu.CompilerParams(
            dimension_semantics=("arbitrary",)),
    )(a, mask1, mask2, w1, w2, bn)

    # (Cout, M) lane-dense result -> NCHW (tiny transpose; TODO above).
    return jnp.transpose(out_t.reshape(Cout, N, Hh, Wh), (1, 0, 2, 3))


# ----------------------------------------------------------------------------
# Pure-JAX f32 reference (independent lowering) for a sanity check
# ----------------------------------------------------------------------------
def reference_forward(params, x):
    N, Cin, H, W = x.shape
    p = x.reshape(N, Cin, H // 2, 2, W // 2, 2).max(axis=(3, 5))

    def conv_bn_relu(h, w, g, b, eps=1e-5):
        y = lax.conv_general_dilated(
            h, w, window_strides=(1, 1), padding=((1, 1), (1, 1)),
            dimension_numbers=("NCHW", "OIHW", "NCHW"),
            precision=lax.Precision.HIGHEST)
        mean = jnp.mean(y, axis=(0, 2, 3), keepdims=True)
        var = jnp.mean((y - mean) ** 2, axis=(0, 2, 3), keepdims=True)
        yn = (y - mean) / jnp.sqrt(var + eps)
        yn = yn * g[None, :, None, None] + b[None, :, None, None]
        return jnp.maximum(yn, 0.0)

    h = conv_bn_relu(p, params["c1_w"], params["bn1_g"], params["bn1_b"])
    h = conv_bn_relu(h, params["c2_w"], params["bn2_g"], params["bn2_b"])
    return h


# ----------------------------------------------------------------------------
# Main
# ----------------------------------------------------------------------------
if __name__ == "__main__":
    in_features, out_features = 8, 16
    N, H, W = 2, 16, 16

    key = jax.random.PRNGKey(0)
    ks = jax.random.split(key, 7)
    params = {
        "c1_w": 0.1 * jax.random.normal(ks[0], (out_features, in_features, 3, 3), jnp.float32),
        "bn1_g": 1.0 + 0.1 * jax.random.normal(ks[1], (out_features,), jnp.float32),
        "bn1_b": 0.1 * jax.random.normal(ks[2], (out_features,), jnp.float32),
        "c2_w": 0.1 * jax.random.normal(ks[3], (out_features, out_features, 3, 3), jnp.float32),
        "bn2_g": 1.0 + 0.1 * jax.random.normal(ks[4], (out_features,), jnp.float32),
        "bn2_b": 0.1 * jax.random.normal(ks[5], (out_features,), jnp.float32),
    }
    x = jax.random.normal(ks[6], (N, in_features, H, W), jnp.float32)

    out = jax.block_until_ready(encoder_forward(params, x))
    assert out.shape == (N, out_features, H // 2, W // 2), out.shape

    ref = reference_forward(params, x)
    max_err = float(jnp.max(jnp.abs(out - ref)))
    # bf16 MXU operands vs a pure-f32 reference -> allow a few e-2 of slack.
    assert jnp.allclose(out, ref, rtol=3e-2, atol=3e-2), max_err

    print("KERNEL_OK")
</pallas_src>

<mosaic_0001>
module attributes {stable_mosaic.version = 11 : i64} {
  func.func @_encoder_kernel(%arg0: i32, %arg1: memref<8x128xf32, #tpu.memory_space<vmem>>, %arg2: memref<72x128xf32, #tpu.memory_space<vmem>>, %arg3: memref<144x128xf32, #tpu.memory_space<vmem>>, %arg4: memref<16x72xbf16, #tpu.memory_space<vmem>>, %arg5: memref<16x144xbf16, #tpu.memory_space<vmem>>, %arg6: memref<16x4xf32, #tpu.memory_space<vmem>>, %arg7: memref<16x128xf32, #tpu.memory_space<vmem>>) attributes {dimension_semantics = [#tpu.dimension_semantics<arbitrary>], iteration_bounds = array<i64: 1>, scalar_prefetch = 0 : i64, scratch_operands = 0 : i64, tpu.core_type = #tpu.core_type<tc>, window_params = [{pipeline_mode = #tpu.pipeline_mode<synchronous>, transform_indices = @transform_0, window_bounds = array<i64: 8, 128>}, {pipeline_mode = #tpu.pipeline_mode<synchronous>, transform_indices = @transform_1, window_bounds = array<i64: 72, 128>}, {pipeline_mode = #tpu.pipeline_mode<synchronous>, transform_indices = @transform_2, window_bounds = array<i64: 144, 128>}, {pipeline_mode = #tpu.pipeline_mode<synchronous>, transform_indices = @transform_3, window_bounds = array<i64: 16, 72>}, {pipeline_mode = #tpu.pipeline_mode<synchronous>, transform_indices = @transform_4, window_bounds = array<i64: 16, 144>}, {pipeline_mode = #tpu.pipeline_mode<synchronous>, transform_indices = @transform_5, window_bounds = array<i64: 16, 4>}, {pipeline_mode = #tpu.pipeline_mode<synchronous>, transform_indices = @transform_6, window_bounds = array<i64: 16, 128>}]} {
    %c0 = arith.constant 0 : index
    %c0_0 = arith.constant 0 : index
    %0 = vector.load %arg6[%c0, %c0_0] : memref<16x4xf32, #tpu.memory_space<vmem>>, vector<16x4xf32>
    %c0_1 = arith.constant 0 : index
    %c0_2 = arith.constant 0 : index
    %1 = vector.load %arg1[%c0_1, %c0_2] : memref<8x128xf32, #tpu.memory_space<vmem>>, vector<8x128xf32>
    %c9_i32 = arith.constant 9 : i32
    %2 = tpu.dynamic_rotate %1 by %c9_i32 dim 1 : vector<8x128xf32>, i32 -> vector<8x128xf32>
    %c8_i32 = arith.constant 8 : i32
    %3 = tpu.dynamic_rotate %1 by %c8_i32 dim 1 : vector<8x128xf32>, i32 -> vector<8x128xf32>
    %c7_i32 = arith.constant 7 : i32
    %4 = tpu.dynamic_rotate %1 by %c7_i32 dim 1 : vector<8x128xf32>, i32 -> vector<8x128xf32>
    %c1_i32 = arith.constant 1 : i32
    %5 = tpu.dynamic_rotate %1 by %c1_i32 dim 1 : vector<8x128xf32>, i32 -> vector<8x128xf32>
    %c127_i32 = arith.constant 127 : i32
    %6 = tpu.dynamic_rotate %1 by %c127_i32 dim 1 : vector<8x128xf32>, i32 -> vector<8x128xf32>
    %c121_i32 = arith.constant 121 : i32
    %7 = tpu.dynamic_rotate %1 by %c121_i32 dim 1 : vector<8x128xf32>, i32 -> vector<8x128xf32>
    %c120_i32 = arith.constant 120 : i32
    %8 = tpu.dynamic_rotate %1 by %c120_i32 dim 1 : vector<8x128xf32>, i32 -> vector<8x128xf32>
    %c119_i32 = arith.constant 119 : i32
    %9 = tpu.dynamic_rotate %1 by %c119_i32 dim 1 : vector<8x128xf32>, i32 -> vector<8x128xf32>
    %10 = tpu.concatenate %2, %3, %4, %5, %1, %6, %7, %8, %9 in 0 : vector<8x128xf32>, vector<8x128xf32>, vector<8x128xf32>, vector<8x128xf32>, vector<8x128xf32>, vector<8x128xf32>, vector<8x128xf32>, vector<8x128xf32>, vector<8x128xf32> -> vector<72x128xf32>
    %c0_3 = arith.constant 0 : index
    %c0_4 = arith.constant 0 : index
    %11 = vector.load %arg2[%c0_3, %c0_4] : memref<72x128xf32, #tpu.memory_space<vmem>>, vector<72x128xf32>
    %12 = arith.mulf %10, %11 : vector<72x128xf32>
    %13 = arith.truncf %12 : vector<72x128xf32> to vector<72x128xbf16>
    %c0_5 = arith.constant 0 : index
    %c0_6 = arith.constant 0 : index
    %14 = vector.load %arg4[%c0_5, %c0_6] : memref<16x72xbf16, #tpu.memory_space<vmem>>, vector<16x72xbf16>
    %cst = arith.constant dense<0.000000e+00> : vector<16x128xf32>
    %15 = tpu.matmul %14, %13, %cst {dimension_numbers = #tpu.dot_dimension_numbers<[1], [0], [0], [1], [0, 0, 1, 1], [], []>} : vector<16x72xbf16>, vector<72x128xbf16>, vector<16x128xf32> -> vector<16x128xf32>
    %16 = vector.extract_strided_slice %0 {offsets = [0, 0], sizes = [16, 1], strides = [1, 1]} : vector<16x4xf32> to vector<16x1xf32>
    %17 = vector.extract_strided_slice %0 {offsets = [0, 1], sizes = [16, 1], strides = [1, 1]} : vector<16x4xf32> to vector<16x1xf32>
    %cst_7 = arith.constant dense<0.000000e+00> : vector<16xf32>
    %18 = vector.multi_reduction <add>, %15, %cst_7 [1] : vector<16x128xf32> to vector<16xf32>
    %19 = vector.shape_cast %18 : vector<16xf32> to vector<16x1xf32>
    %cst_8 = arith.constant 1.280000e+02 : f32
    %20 = vector.broadcast %cst_8 : f32 to vector<16x1xf32>
    %21 = arith.divf %19, %20 : vector<16x1xf32>
    %22 = arith.mulf %15, %15 : vector<16x128xf32>
    %cst_9 = arith.constant dense<0.000000e+00> : vector<16xf32>
    %23 = vector.multi_reduction <add>, %22, %cst_9 [1] : vector<16x128xf32> to vector<16xf32>
    %24 = vector.shape_cast %23 : vector<16xf32> to vector<16x1xf32>
    %cst_10 = arith.constant 1.280000e+02 : f32
    %25 = vector.broadcast %cst_10 : f32 to vector<16x1xf32>
    %26 = arith.divf %24, %25 : vector<16x1xf32>
    %27 = arith.mulf %21, %21 : vector<16x1xf32>
    %28 = arith.subf %26, %27 : vector<16x1xf32>
    %cst_11 = arith.constant 0.000000e+00 : f32
    %29 = vector.broadcast %cst_11 : f32 to vector<16x1xf32>
    %30 = arith.maximumf %28, %29 : vector<16x1xf32>
    %cst_12 = arith.constant 9.99999974E-6 : f32
    %31 = vector.broadcast %cst_12 : f32 to vector<16x1xf32>
    %32 = arith.addf %30, %31 : vector<16x1xf32>
    %33 = math.rsqrt %32 : vector<16x1xf32>
    %34 = arith.mulf %16, %33 : vector<16x1xf32>
    %35 = arith.mulf %21, %34 : vector<16x1xf32>
    %36 = arith.subf %17, %35 : vector<16x1xf32>
    %37 = vector.broadcast %34 : vector<16x1xf32> to vector<16x128xf32>
    %38 = arith.mulf %15, %37 : vector<16x128xf32>
    %39 = vector.broadcast %36 : vector<16x1xf32> to vector<16x128xf32>
    %40 = arith.addf %38, %39 : vector<16x128xf32>
    %cst_13 = arith.constant 0.000000e+00 : f32
    %41 = vector.broadcast %cst_13 : f32 to vector<16x128xf32>
    %42 = arith.maximumf %40, %41 : vector<16x128xf32>
    %c9_i32_14 = arith.constant 9 : i32
    %43 = tpu.dynamic_rotate %42 by %c9_i32_14 dim 1 : vector<16x128xf32>, i32 -> vector<16x128xf32>
    %c8_i32_15 = arith.constant 8 : i32
    %44 = tpu.dynamic_rotate %42 by %c8_i32_15 dim 1 : vector<16x128xf32>, i32 -> vector<16x128xf32>
    %c7_i32_16 = arith.constant 7 : i32
    %45 = tpu.dynamic_rotate %42 by %c7_i32_16 dim 1 : vector<16x128xf32>, i32 -> vector<16x128xf32>
    %c1_i32_17 = arith.constant 1 : i32
    %46 = tpu.dynamic_rotate %42 by %c1_i32_17 dim 1 : vector<16x128xf32>, i32 -> vector<16x128xf32>
    %c127_i32_18 = arith.constant 127 : i32
    %47 = tpu.dynamic_rotate %42 by %c127_i32_18 dim 1 : vector<16x128xf32>, i32 -> vector<16x128xf32>
    %c121_i32_19 = arith.constant 121 : i32
    %48 = tpu.dynamic_rotate %42 by %c121_i32_19 dim 1 : vector<16x128xf32>, i32 -> vector<16x128xf32>
    %c120_i32_20 = arith.constant 120 : i32
    %49 = tpu.dynamic_rotate %42 by %c120_i32_20 dim 1 : vector<16x128xf32>, i32 -> vector<16x128xf32>
    %c119_i32_21 = arith.constant 119 : i32
    %50 = tpu.dynamic_rotate %42 by %c119_i32_21 dim 1 : vector<16x128xf32>, i32 -> vector<16x128xf32>
    %51 = tpu.concatenate %43, %44, %45, %46, %42, %47, %48, %49, %50 in 0 : vector<16x128xf32>, vector<16x128xf32>, vector<16x128xf32>, vector<16x128xf32>, vector<16x128xf32>, vector<16x128xf32>, vector<16x128xf32>, vector<16x128xf32>, vector<16x128xf32> -> vector<144x128xf32>
    %c0_22 = arith.constant 0 : index
    %c0_23 = arith.constant 0 : index
    %52 = vector.load %arg3[%c0_22, %c0_23] : memref<144x128xf32, #tpu.memory_space<vmem>>, vector<144x128xf32>
    %53 = arith.mulf %51, %52 : vector<144x128xf32>
    %54 = arith.truncf %53 : vector<144x128xf32> to vector<144x128xbf16>
    %c0_24 = arith.constant 0 : index
    %c0_25 = arith.constant 0 : index
    %55 = vector.load %arg5[%c0_24, %c0_25] : memref<16x144xbf16, #tpu.memory_space<vmem>>, vector<16x144xbf16>
    %cst_26 = arith.constant dense<0.000000e+00> : vector<16x128xf32>
    %56 = tpu.matmul %55, %54, %cst_26 {dimension_numbers = #tpu.dot_dimension_numbers<[1], [0], [0], [1], [0, 0, 1, 1], [], []>} : vector<16x144xbf16>, vector<144x128xbf16>, vector<16x128xf32> -> vector<16x128xf32>
    %57 = vector.extract_strided_slice %0 {offsets = [0, 2], sizes = [16, 1], strides = [1, 1]} : vector<16x4xf32> to vector<16x1xf32>
    %58 = vector.extract_strided_slice %0 {offsets = [0, 3], sizes = [16, 1], strides = [1, 1]} : vector<16x4xf32> to vector<16x1xf32>
    %cst_27 = arith.constant dense<0.000000e+00> : vector<16xf32>
    %59 = vector.multi_reduction <add>, %56, %cst_27 [1] : vector<16x128xf32> to vector<16xf32>
    %60 = vector.shape_cast %59 : vector<16xf32> to vector<16x1xf32>
    %cst_28 = arith.constant 1.280000e+02 : f32
    %61 = vector.broadcast %cst_28 : f32 to vector<16x1xf32>
    %62 = arith.divf %60, %61 : vector<16x1xf32>
    %63 = arith.mulf %56, %56 : vector<16x128xf32>
    %cst_29 = arith.constant dense<0.000000e+00> : vector<16xf32>
    %64 = vector.multi_reduction <add>, %63, %cst_29 [1] : vector<16x128xf32> to vector<16xf32>
    %65 = vector.shape_cast %64 : vector<16xf32> to vector<16x1xf32>
    %cst_30 = arith.constant 1.280000e+02 : f32
    %66 = vector.broadcast %cst_30 : f32 to vector<16x1xf32>
    %67 = arith.divf %65, %66 : vector<16x1xf32>
    %68 = arith.mulf %62, %62 : vector<16x1xf32>
    %69 = arith.subf %67, %68 : vector<16x1xf32>
    %cst_31 = arith.constant 0.000000e+00 : f32
    %70 = vector.broadcast %cst_31 : f32 to vector<16x1xf32>
    %71 = arith.maximumf %69, %70 : vector<16x1xf32>
    %cst_32 = arith.constant 9.99999974E-6 : f32
    %72 = vector.broadcast %cst_32 : f32 to vector<16x1xf32>
    %73 = arith.addf %71, %72 : vector<16x1xf32>
    %74 = math.rsqrt %73 : vector<16x1xf32>
    %75 = arith.mulf %57, %74 : vector<16x1xf32>
    %76 = arith.mulf %62, %75 : vector<16x1xf32>
    %77 = arith.subf %58, %76 : vector<16x1xf32>
    %78 = vector.broadcast %75 : vector<16x1xf32> to vector<16x128xf32>
    %79 = arith.mulf %56, %78 : vector<16x128xf32>
    %80 = vector.broadcast %77 : vector<16x1xf32> to vector<16x128xf32>
    %81 = arith.addf %79, %80 : vector<16x128xf32>
    %cst_33 = arith.constant 0.000000e+00 : f32
    %82 = vector.broadcast %cst_33 : f32 to vector<16x128xf32>
    %83 = arith.maximumf %81, %82 : vector<16x128xf32>
    %c0_34 = arith.constant 0 : index
    %c0_35 = arith.constant 0 : index
    %84 = vector.load %arg7[%c0_34, %c0_35] : memref<16x128xf32, #tpu.memory_space<vmem>>, vector<16x128xf32>
    tpu.vector_store %arg7[%c0_34, %c0_35], %83 {strides = array<i32>} : memref<16x128xf32, #tpu.memory_space<vmem>>, vector<16x128xf32>,
    return
  }
  func.func @transform_0(%arg0: i32) -> (i32, i32) {
    %c0_i32 = arith.constant 0 : i32
    %c0_i32_0 = arith.constant 0 : i32
    %c0_i32_1 = arith.constant 0 : i32
    return %c0_i32, %c0_i32_0 : i32, i32
  }
  func.func @transform_1(%arg0: i32) -> (i32, i32) {
    %c0_i32 = arith.constant 0 : i32
    %c0_i32_0 = arith.constant 0 : i32
    %c0_i32_1 = arith.constant 0 : i32
    return %c0_i32, %c0_i32_0 : i32, i32
  }
  func.func @transform_2(%arg0: i32) -> (i32, i32) {
    %c0_i32 = arith.constant 0 : i32
    %c0_i32_0 = arith.constant 0 : i32
    %c0_i32_1 = arith.constant 0 : i32
    return %c0_i32, %c0_i32_0 : i32, i32
  }
  func.func @transform_3(%arg0: i32) -> (i32, i32) {
    %c0_i32 = arith.constant 0 : i32
    %c0_i32_0 = arith.constant 0 : i32
    %c0_i32_1 = arith.constant 0 : i32
    return %c0_i32, %c0_i32_0 : i32, i32
  }
  func.func @transform_4(%arg0: i32) -> (i32, i32) {
    %c0_i32 = arith.constant 0 : i32
    %c0_i32_0 = arith.constant 0 : i32
    %c0_i32_1 = arith.constant 0 : i32
    return %c0_i32, %c0_i32_0 : i32, i32
  }
  func.func @transform_5(%arg0: i32) -> (i32, i32) {
    %c0_i32 = arith.constant 0 : i32
    %c0_i32_0 = arith.constant 0 : i32
    %c0_i32_1 = arith.constant 0 : i32
    return %c0_i32, %c0_i32_0 : i32, i32
  }
  func.func @transform_6(%arg0: i32) -> (i32, i32) {
    %c0_i32 = arith.constant 0 : i32
    %c0_i32_0 = arith.constant 0 : i32
    %c0_i32_1 = arith.constant 0 : i32
    return %c0_i32, %c0_i32_0 : i32, i32
  }
}

</mosaic_0001>

<llo_original>
// kernel: encoder_forward.1
$region0: #{encoder_forward.1}
  #allocation0 [shape = 'u32[]', space=smem, size = 0x4, offset = 0x4, fixed_abs, tag = 'smem constant byte address 0x4 - core index']
  #allocation1 [shape = 'u32[144,128]{1,0:T(1,128)}', space=vmem, size = 0x12000, scoped, tag = 'internal scratch']
  %s0 = inlined_call_operand.vmem [shape: f32[8,128], index: 0, kind: input, shape index: {}]
  %s1 = inlined_call_operand.vmem [shape: f32[72,128], index: 1, kind: input, shape index: {}]
  %s2 = inlined_call_operand.vmem [shape: f32[144,128], index: 2, kind: input, shape index: {}]
  %s3 = inlined_call_operand.vmem [shape: bf16[16,72], index: 3, kind: input, shape index: {}]
  %s4 = inlined_call_operand.vmem [shape: bf16[16,144], index: 4, kind: input, shape index: {}]
  %s5 = inlined_call_operand.vmem [shape: f32[16,4], index: 5, kind: input, shape index: {}]
  %s6 = inlined_call_operand.vmem [shape: f32[16,128], index: 6, kind: output, shape index: {}]
  %s7 = sld [smem:[#allocation0]]
  $region34: #{encoder_forward.1} parent=0
    _
  %s9 = ssub.s32 1, %s7
  %s10 = scalar_select 0, %s9, %s7
  // Predicated region
  $region2: #{encoder_forward.1} parent=0 // pred_check
    _
  $region3: #{encoder_forward.1} parent=0 // pred_check_branch
    %12 = sbr.rel (0) target = $region5
  $region4: #{encoder_forward.1} parent=0 // pred_region
    _
  $region5: #{encoder_forward.1} parent=0 // pred_fallthru
    _
  // Predicated region
  $region6: #{encoder_forward.1} parent=0 // pred_check
    _
  $region7: #{encoder_forward.1} parent=0 // pred_check_branch
    %14 = sbr.rel (0) target = $region9
  $region8: #{encoder_forward.1} parent=0 // pred_region
    _
  $region9: #{encoder_forward.1} parent=0 // pred_fallthru
    _
  // Predicated region
  $region10: #{encoder_forward.1} parent=0 // pred_check
    _
  $region11: #{encoder_forward.1} parent=0 // pred_check_branch
    %16 = sbr.rel (0) target = $region13
  $region12: #{encoder_forward.1} parent=0 // pred_region
    _
  $region13: #{encoder_forward.1} parent=0 // pred_fallthru
    _
  // Predicated region
  $region14: #{encoder_forward.1} parent=0 // pred_check
    _
  $region15: #{encoder_forward.1} parent=0 // pred_check_branch
    %18 = sbr.rel (0) target = $region17
  $region16: #{encoder_forward.1} parent=0 // pred_region
    _
  $region17: #{encoder_forward.1} parent=0 // pred_fallthru
    _
  // Predicated region
  $region18: #{encoder_forward.1} parent=0 // pred_check
    _
  $region19: #{encoder_forward.1} parent=0 // pred_check_branch
    %20 = sbr.rel (0) target = $region21
  $region20: #{encoder_forward.1} parent=0 // pred_region
    _
  $region21: #{encoder_forward.1} parent=0 // pred_fallthru
    _
  // Predicated region
  $region22: #{encoder_forward.1} parent=0 // pred_check
    _
  $region23: #{encoder_forward.1} parent=0 // pred_check_branch
    %22 = sbr.rel (0) target = $region25
  $region24: #{encoder_forward.1} parent=0 // pred_region
    _
  $region25: #{encoder_forward.1} parent=0 // pred_fallthru
    _
  %v24 = vld [vmem:[%s5] sm:$0xff]
  %v25 = vld [vmem:[%s5 + $0x8] sm:$0xff]
  %v26 = vld [vmem:[%s0] sm:$0xff]
  %27 = vrot.lane.b32.xlu0 %v26, 9
  %v28 = vpop.permute.xlu0 %27
  %29 = vrot.lane.b32.xlu0 %v26, 8
  %v30 = vpop.permute.xlu0 %29
  %31 = vrot.lane.b32.xlu0 %v26, 7
  %v32 = vpop.permute.xlu0 %31
  %33 = vrot.lane.b32.xlu0 %v26, 1
  %v34 = vpop.permute.xlu0 %33
  %35 = vrot.lane.b32.xlu0 %v26, 127
  %v36 = vpop.permute.xlu0 %35
  %37 = vrot.lane.b32.xlu0 %v26, 121
  %v38 = vpop.permute.xlu0 %37
  %39 = vrot.lane.b32.xlu0 %v26, 120
  %v40 = vpop.permute.xlu0 %39
  %41 = vrot.lane.b32.xlu0 %v26, 119
  %v42 = vpop.permute.xlu0 %41
  %v43 = vld [vmem:[%s1] sm:$0xff]
  %v44 = vld [vmem:[%s1 + $0x8] sm:$0xff]
  %v45 = vld [vmem:[%s1 + $0x10] sm:$0xff]
  %v46 = vld [vmem:[%s1 + $0x18] sm:$0xff]
  %v47 = vld [vmem:[%s1 + $0x20] sm:$0xff]
  %v48 = vld [vmem:[%s1 + $0x28] sm:$0xff]
  %v49 = vld [vmem:[%s1 + $0x30] sm:$0xff]
  %v50 = vld [vmem:[%s1 + $0x38] sm:$0xff]
  %v51 = vld [vmem:[%s1 + $0x40] sm:$0xff]
  %v52 = vmul.f32 %v28, %v43
  %v53 = vmul.f32 %v30, %v44
  %v54 = vmul.f32 %v32, %v45
  %v55 = vmul.f32 %v34, %v46
  %v56 = vmul.f32 %v26, %v47
  %v57 = vmul.f32 %v36, %v48
  %v58 = vmul.f32 %v38, %v49
  %v59 = vmul.f32 %v40, %v50
  %v60 = vmul.f32 %v42, %v51
  %v61 = vpack.c.bf16 %v53, %v52
  %v62 = vpack.c.bf16 %v55, %v54
  %v63 = vpack.c.bf16 %v57, %v56
  %v64 = vpack.c.bf16 %v59, %v58
  %v65 = vpack.c.bf16 %v60, %v60
  %v66 = vld [vmem:[%s3] sm:$0xf]
  %v67 = vld [vmem:[%s3 + $0x4] sm:$0xf]
  %v70 = vunpack.c.l.b16 %v66
  %v71 = vunpack.c.l.b16 %v67
  %v72 = vpack.c.b16 %v71, %v70
  %vm73 = vcmask 588800
  %v75 = vsel %vm73, %v72, 0
  %vm77 = vcmask 1043456
  %v79 = vsel %vm77, %v65, 0
  %81 = vmatprep.subr.bf16.mxu0 0
  %82 = vmatpush1.bf16.msra.mxu0 0
  %83 = vmatprep.subr.bf16.mxu0 0
  %84 = vmatpush1.bf16.msra.mxu0 0
  %85 = vmatprep.subr.bf16.mxu0 0
  %86 = vmatpush1.bf16.msra.mxu0 0
  %87 = vmatprep.subr.bf16.mxu0 0
  %88 = vmatpush1.bf16.msra.mxu0 %v79
  %89 = vmatprep.subr.bf16.mxu0 0
  %90 = vmatpush1.bf16.msra.mxu0 %v64
  %91 = vmatprep.subr.bf16.mxu0 0
  %92 = vmatpush1.bf16.msra.mxu0 %v63
  %93 = vmatprep.subr.bf16.mxu0 0
  %94 = vmatpush1.bf16.msra.mxu0 %v62
  %95 = vmatprep.subr.bf16.mxu0 0
  %96 = vmatpush1.bf16.msra.mxu0 %v61
  %97 = vmatprep.subr.bf16.mxu0 0
  %98 = vmatpush2.bf16.msra.mxu0 0
  %99 = vmatprep.subr.bf16.mxu0 0
  %100 = vmatpush2.bf16.msra.mxu0 0
  %101 = vmatprep.subr.bf16.mxu0 0
  %102 = vmatpush2.bf16.msra.mxu0 0
  %103 = vmatprep.subr.bf16.mxu0 0
  %104 = vmatpush2.bf16.msra.mxu0 0
  %105 = vmatprep.subr.bf16.mxu0 0
  %106 = vmatpush2.bf16.msra.mxu0 0
  %107 = vmatprep.subr.bf16.mxu0 0
  %108 = vmatpush2.bf16.msra.mxu0 0
  %109 = vmatprep.subr.bf16.mxu0 0
  %110 = vmatpush2.bf16.msra.mxu0 0
  %111 = vmatprep.subr.bf16.mxu0 0
  %112 = vmatpush2.bf16.msra.mxu0 0
  %113 = vmatprep.mubr.bf16.mxu0 0
  %114 = vmatmul.mubr.bf16.gmra.mxu0 %v75
  %v115 = vpop.f32.mrf.mxu0
  %v116 = vadd.f32 0.0, %v115
  %v117 = vpop.f32.mrf.mxu0
  %v118 = vpop.f32.mrf.mxu0
  %v119 = vadd.f32 0.0, %v118
  %v120 = vpop.f32.mrf.mxu0
  %121 = vdwg.mxu0
  %122 = vadd.xlane.f32.xlu0 %v116
  %v123 = vpop.xlane.xlu0 %122
  %124 = vadd.xlane.f32.xlu0 %v119
  %v125 = vpop.xlane.xlu0 %124
  %v126 = vrcp.pop 128.0
  %v127 = vmul.f32 %v123, %v126
  %v128 = vmul.f32 %v125, %v126
  %v129 = vmul.f32 %v116, %v116
  %v130 = vmul.f32 %v119, %v119
  %131 = vadd.xlane.f32.xlu0 %v129
  %v132 = vpop.xlane.xlu0 %131
  %133 = vadd.xlane.f32.xlu0 %v130
  %v134 = vpop.xlane.xlu0 %133
  %v135 = vmul.f32 %v132, %v126
  %v136 = vmul.f32 %v134, %v126
  %v137 = vmul.f32 %v127, %v127
  %v138 = vmul.f32 %v128, %v128
  %v139 = vsub.f32 %v135, %v137
  %v140 = vsub.f32 %v136, %v138
  %v141 = vmax.f32 %v139, 0.0
  %v142 = vmax.f32 %v140, 0.0
  %v143 = vadd.f32 %v141, 1e-05
  %v144 = vadd.f32 %v142, 1e-05
  %v145 = vrsqrt.pop %v143
  %v146 = vrsqrt.pop %v144
  %v147 = vmul.f32 %v24, %v145
  %v148 = vmul.f32 %v25, %v146
  %v149 = vmul.f32 %v127, %v147
  %v150 = vmul.f32 %v128, %v148
  %153 = vrot.lane.b32.xlu0 %v149, 1
  %v154 = vpop.permute.xlu0 %153
  %155 = vrot.lane.b32.xlu0 %v150, 1
  %v156 = vpop.permute.xlu0 %155
  %v159 = vsub.f32 %v24, %v154
  %v160 = vsub.f32 %v25, %v156
  %162 = vset.pattern.permute.xlu0 0
  %163 = vperm.xlu0 %162, %v147
  %v164 = vpop.permute.xlu0 %163
  %167 = vset.pattern.permute.xlu0 0
  %168 = vperm.xlu0 %167, %v148
  %v169 = vpop.permute.xlu0 %168
  %v171 = vmul.f32 %v116, %v164
  %v172 = vmul.f32 %v119, %v169
  %174 = vset.pattern.permute.xlu0 1
  %175 = vperm.xlu0 %174, %v159
  %v176 = vpop.permute.xlu0 %175
  %179 = vset.pattern.permute.xlu0 1
  %180 = vperm.xlu0 %179, %v160
  %v181 = vpop.permute.xlu0 %180
  %v183 = vadd.f32 %v171, %v176
  %v184 = vadd.f32 %v172, %v181
  %v185 = vmax.f32 %v183, 0.0
  %v186 = vmax.f32 %v184, 0.0
  %187 = vrot.lane.b32.xlu0 %v185, 9
  %v188 = vpop.permute.xlu0 %187
  %189 = vrot.lane.b32.xlu0 %v186, 9
  %v190 = vpop.permute.xlu0 %189
  %191 = vrot.lane.b32.xlu0 %v185, 8
  %v192 = vpop.permute.xlu0 %191
  %193 = vrot.lane.b32.xlu0 %v186, 8
  %v194 = vpop.permute.xlu0 %193
  %195 = vrot.lane.b32.xlu0 %v185, 7
  %v196 = vpop.permute.xlu0 %195
  %197 = vrot.lane.b32.xlu0 %v186, 7
  %v198 = vpop.permute.xlu0 %197
  %199 = vrot.lane.b32.xlu0 %v185, 1
  %v200 = vpop.permute.xlu0 %199
  %201 = vrot.lane.b32.xlu0 %v186, 1
  %v202 = vpop.permute.xlu0 %201
  %203 = vrot.lane.b32.xlu0 %v185, 127
  %v204 = vpop.permute.xlu0 %203
  %205 = vrot.lane.b32.xlu0 %v186, 127
  %v206 = vpop.permute.xlu0 %205
  %207 = vrot.lane.b32.xlu0 %v185, 121
  %v208 = vpop.permute.xlu0 %207
  %209 = vrot.lane.b32.xlu0 %v186, 121
  %v210 = vpop.permute.xlu0 %209
  %211 = vrot.lane.b32.xlu0 %v185, 120
  %v212 = vpop.permute.xlu0 %211
  %213 = vrot.lane.b32.xlu0 %v186, 120
  %v214 = vpop.permute.xlu0 %213
  %215 = vrot.lane.b32.xlu0 %v185, 119
  %v216 = vpop.permute.xlu0 %215
  %217 = vrot.lane.b32.xlu0 %v186, 119
  %v218 = vpop.permute.xlu0 %217
  %v219 = vld [vmem:[%s2] sm:$0xff]
  %v220 = vld [vmem:[%s2 + $0x8] sm:$0xff]
  %v221 = vld [vmem:[%s2 + $0x10] sm:$0xff]
  %v222 = vld [vmem:[%s2 + $0x18] sm:$0xff]
  %v223 = vld [vmem:[%s2 + $0x20] sm:$0xff]
  %v224 = vld [vmem:[%s2 + $0x28] sm:$0xff]
  %v225 = vld [vmem:[%s2 + $0x30] sm:$0xff]
  %v226 = vld [vmem:[%s2 + $0x38] sm:$0xff]
  %v227 = vld [vmem:[%s2 + $0x40] sm:$0xff]
  %v228 = vld [vmem:[%s2 + $0x48] sm:$0xff]
  %v229 = vld [vmem:[%s2 + $0x50] sm:$0xff]
  %v230 = vld [vmem:[%s2 + $0x58] sm:$0xff]
  %v231 = vld [vmem:[%s2 + $0x60] sm:$0xff]
  %v232 = vld [vmem:[%s2 + $0x68] sm:$0xff]
  %v233 = vld [vmem:[%s2 + $0x70] sm:$0xff]
  %v234 = vld [vmem:[%s2 + $0x78] sm:$0xff]
  %v235 = vld [vmem:[%s2 + $0x80] sm:$0xff]
  %v236 = vld [vmem:[%s2 + $0x88] sm:$0xff]
  %v237 = vmul.f32 %v188, %v219
  %v238 = vmul.f32 %v190, %v220
  %v239 = vmul.f32 %v192, %v221
  %v240 = vmul.f32 %v194, %v222
  %v241 = vmul.f32 %v196, %v223
  %v242 = vmul.f32 %v198, %v224
  %v243 = vmul.f32 %v200, %v225
  %v244 = vmul.f32 %v202, %v226
  %v245 = vmul.f32 %v185, %v227
  %v246 = vmul.f32 %v186, %v228
  %v247 = vmul.f32 %v204, %v229
  %v248 = vmul.f32 %v206, %v230
  %v249 = vmul.f32 %v208, %v231
  %v250 = vmul.f32 %v210, %v232
  %v251 = vmul.f32 %v212, %v233
  %v252 = vmul.f32 %v214, %v234
  %v253 = vmul.f32 %v216, %v235
  %v254 = vmul.f32 %v218, %v236
  %v255 = vpack.c.bf16 %v238, %v237
  %v256 = vpack.c.bf16 %v240, %v239
  %v257 = vpack.c.bf16 %v242, %v241
  %v258 = vpack.c.bf16 %v244, %v243
  %v259 = vpack.c.bf16 %v246, %v245
  %v260 = vpack.c.bf16 %v248, %v247
  %v261 = vpack.c.bf16 %v250, %v249
  %v262 = vpack.c.bf16 %v252, %v251
  %v263 = vpack.c.bf16 %v254, %v253
  %v264 = vld [vmem:[%s4] sm:$0xff]
  %v265 = vld [vmem:[%s4 + $0x8] sm:$0xff]
  %v268 = vunpack.c.l.b16 %v264
  %v269 = vunpack.c.h.b16 %v264
  %v270 = vunpack.c.l.b16 %v265
  %v271 = vunpack.c.h.b16 %v265
  %v272 = vpack.c.b16 %v270, %v268
  %v273 = vpack.c.b16 %v271, %v269
  %vm275 = vcmask 130048
  %v277 = vsel %vm275, %v273, 0
  %279 = vmatprep.subr.bf16.mxu0 0
  %280 = vmatpush1.bf16.msra.mxu0 %v262
  %281 = vmatprep.subr.bf16.mxu0 0
  %282 = vmatpush1.bf16.msra.mxu0 %v261
  %283 = vmatprep.subr.bf16.mxu0 0
  %284 = vmatpush1.bf16.msra.mxu0 %v260
  %285 = vmatprep.subr.bf16.mxu0 0
  %286 = vmatpush1.bf16.msra.mxu0 %v259
  %287 = vmatprep.subr.bf16.mxu0 0
  %288 = vmatpush1.bf16.msra.mxu0 %v258
  %289 = vmatprep.subr.bf16.mxu0 0
  %290 = vmatpush1.bf16.msra.mxu0 %v257
  %291 = vmatprep.subr.bf16.mxu0 0
  %292 = vmatpush1.bf16.msra.mxu0 %v256
  %293 = vmatprep.subr.bf16.mxu0 0
  %294 = vmatpush1.bf16.msra.mxu0 %v255
  %295 = vmatprep.subr.bf16.mxu0 0
  %296 = vmatpush2.bf16.msra.mxu0 0
  %297 = vmatprep.subr.bf16.mxu0 0
  %298 = vmatpush2.bf16.msra.mxu0 0
  %299 = vmatprep.subr.bf16.mxu0 0
  %300 = vmatpush2.bf16.msra.mxu0 0
  %301 = vmatprep.subr.bf16.mxu0 0
  %302 = vmatpush2.bf16.msra.mxu0 0
  %303 = vmatprep.subr.bf16.mxu0 0
  %304 = vmatpush2.bf16.msra.mxu0 0
  %305 = vmatprep.subr.bf16.mxu0 0
  %306 = vmatpush2.bf16.msra.mxu0 0
  %307 = vmatprep.subr.bf16.mxu0 0
  %308 = vmatpush2.bf16.msra.mxu0 0
  %309 = vmatprep.subr.bf16.mxu0 0
  %310 = vmatpush2.bf16.msra.mxu0 %v263
  %311 = vmatprep.mubr.bf16.mxu0 %v277
  %312 = vmatmul.mubr.bf16.gmra.mxu0 %v272
  %v313 = vpop.f32.mrf.mxu0
  %v314 = vadd.f32 0.0, %v313
  %v315 = vpop.f32.mrf.mxu0
  %v316 = vpop.f32.mrf.mxu0
  %v317 = vadd.f32 0.0, %v316
  %v318 = vpop.f32.mrf.mxu0
  %319 = vdwg.mxu0
  %320 = vadd.xlane.f32.xlu0 %v314
  %v321 = vpop.xlane.xlu0 %320
  %322 = vadd.xlane.f32.xlu0 %v317
  %v323 = vpop.xlane.xlu0 %322
  %v324 = vmul.f32 %v321, %v126
  %v325 = vmul.f32 %v323, %v126
  %v326 = vmul.f32 %v314, %v314
  %v327 = vmul.f32 %v317, %v317
  %328 = vadd.xlane.f32.xlu0 %v326
  %v329 = vpop.xlane.xlu0 %328
  %330 = vadd.xlane.f32.xlu0 %v327
  %v331 = vpop.xlane.xlu0 %330
  %v332 = vmul.f32 %v329, %v126
  %v333 = vmul.f32 %v331, %v126
  %v334 = vmul.f32 %v324, %v324
  %v335 = vmul.f32 %v325, %v325
  %v336 = vsub.f32 %v332, %v334
  %v337 = vsub.f32 %v333, %v335
  %v338 = vmax.f32 %v336, 0.0
  %v339 = vmax.f32 %v337, 0.0
  %v340 = vadd.f32 %v338, 1e-05
  %v341 = vadd.f32 %v339, 1e-05
  %v342 = vrsqrt.pop %v340
  %v343 = vrsqrt.pop %v341
  %v344 = vmul.f32 %v24, %v342
  %v345 = vmul.f32 %v25, %v343
  %v346 = vmul.f32 %v324, %v344
  %v347 = vmul.f32 %v325, %v345
  %350 = vrot.lane.b32.xlu0 %v346, 1
  %v351 = vpop.permute.xlu0 %350
  %352 = vrot.lane.b32.xlu0 %v347, 1
  %v353 = vpop.permute.xlu0 %352
  %v356 = vsub.f32 %v24, %v351
  %v357 = vsub.f32 %v25, %v353
  %359 = vset.pattern.permute.xlu0 2
  %360 = vperm.xlu0 %359, %v344
  %v361 = vpop.permute.xlu0 %360
  %364 = vset.pattern.permute.xlu0 2
  %365 = vperm.xlu0 %364, %v345
  %v366 = vpop.permute.xlu0 %365
  %v368 = vmul.f32 %v314, %v361
  %v369 = vmul.f32 %v317, %v366
  %371 = vset.pattern.permute.xlu0 3
  %372 = vperm.xlu0 %371, %v356
  %v373 = vpop.permute.xlu0 %372
  %376 = vset.pattern.permute.xlu0 3
  %377 = vperm.xlu0 %376, %v357
  %v378 = vpop.permute.xlu0 %377
  %v380 = vadd.f32 %v368, %v373
  %v381 = vadd.f32 %v369, %v378
  %v382 = vmax.f32 %v380, 0.0
  %v383 = vmax.f32 %v381, 0.0
  %384 = vst [vmem:[%s6] sm:$0xff] %v382
  %385 = vst [vmem:[%s6 + $0x8] sm:$0xff] %v383
  // Predicated region
  $region26: #{encoder_forward.1} parent=0 // pred_check
    _
  $region27: #{encoder_forward.1} parent=0 // pred_check_branch
    %387 = sbr.rel (0) target = $region29
  $region28: #{encoder_forward.1} parent=0 // pred_region
    _
  $region29: #{encoder_forward.1} parent=0 // pred_fallthru
    _
  // Predicated region
  $region30: #{encoder_forward.1} parent=0 // pred_check
    _
  $region31: #{encoder_forward.1} parent=0 // pred_check_branch
    %389 = sbr.rel (0) target = $region33
  $region32: #{encoder_forward.1} parent=0 // pred_region
    _
  $region33: #{encoder_forward.1} parent=0 // pred_fallthru
    _

</llo_original>
